<compile_context>
chip_gen: v6e
topology: v6e:2x2x1
jax: 0.10.0
libtpu: 0.0.40
codegen_flags: <defaults>
</compile_context>

<pallas_src>
import functools

import jax
import jax.numpy as jnp
from jax.experimental import pallas as pl
from jax.experimental.pallas import tpu as pltpu

_CHUNK = 256  # in-kernel lane sub-tile (multiple of 128)


# -----------------------------------------------------------------------------
# Kernel.  Refs (leading batch dim squeezed via None in the BlockSpec):
#   x_ref  : (C+1, TP)              pixels on lanes, channels (+ones) on sublanes
#   lab_ref: (1,   TP)              int32 labels
#   w1_ref : (classes*F, C+1)       layer-1 weights with b1 folded as last column
#   w2_ref : (classes*hs, classes*F) block-diagonal layer-2 weights
#   b2_ref : (classes*hs, 1)
#   o_ref  : (hs,  TP)              lane-dense output, written chunk by chunk
# -----------------------------------------------------------------------------
def _make_kernel(classes, features, hs, chunk, n_chunks):
    def kernel(x_ref, lab_ref, w1_ref, w2_ref, b2_ref, o_ref):
        # Weights are tiny; load once per grid step, reuse across chunks.
        w1 = w1_ref[...]                          # (classes*F, C+1)
        w2 = w2_ref[...]                          # (classes*hs, classes*F)
        b2 = b2_ref[...]                          # (classes*hs, 1)

        def body(i, carry):
            off = pl.multiple_of(i * chunk, chunk)
            xc = x_ref[:, pl.ds(off, chunk)]      # (C+1, chunk)
            labc = lab_ref[:, pl.ds(off, chunk)]  # (1, chunk)

            # Layer 1, all classes fused, bias folded into the matmul.
            h = jnp.dot(w1, xc, preferred_element_type=jnp.float32)
            h = jnp.maximum(h, 0.0)               # (classes*F, chunk)

            # Layer 2, all classes in one block-diagonal MXU push.
            y = jnp.dot(w2, h, preferred_element_type=jnp.float32) + b2
            y = jnp.maximum(y, 0.0)               # (classes*hs, chunk)

            # Per-pixel class select (each pixel matches at most one class).
            acc = jnp.zeros((hs, chunk), jnp.float32)
            for c in range(classes):              # small static unroll
                acc = jnp.where(labc == c, y[c * hs:(c + 1) * hs, :], acc)

            o_ref[:, pl.ds(off, chunk)] = acc     # aligned, unmasked store
            return carry

        jax.lax.fori_loop(0, n_chunks, body, 0, unroll=(n_chunks <= 8))

    return kernel


def _round_up(v, m):
    return ((v + m - 1) // m) * m


def _choose_tile(hw, batch, *, max_tile=16384, chunk=_CHUNK):
    """Pick (tile, padded_hw).  Prefer the whole spatial extent per batch
    element; otherwise a few large balanced tiles with at most ~one chunk of
    padding.  Never returns a tile smaller than `chunk`.  When batch == 1 the
    single tile is split so the grid has >= 2 parallel steps (v7x megacore)."""
    if hw <= max_tile:
        if batch >= 2:
            tile = _round_up(hw, chunk)
            return tile, tile
        half = _round_up(-(-hw // 2), chunk)
        return half, 2 * half
    n_tiles = -(-hw // max_tile)
    tile = _round_up(-(-hw // n_tiles), chunk)
    return tile, n_tiles * tile


def clusters_up_pallas(image, clusters, params, *, classes, max_tile=16384):
    """image: (B, ms, H, W) f32; clusters: (B, 1, H, W) int; -> (B, hs, H, W)."""
    B, C, H, W = image.shape
    features = params["w1"].shape[-1]
    hs = params["w2"].shape[-1]
    hw = H * W

    # Channels-first, flattened spatial axis (pure reshapes) + ones channel for
    # the folded layer-1 bias.
    x = image.reshape(B, C, hw).astype(jnp.float32)
    x = jnp.concatenate([x, jnp.ones((B, 1, hw), jnp.float32)], axis=1)  # (B,C+1,hw)
    lab = clusters.reshape(B, 1, hw).astype(jnp.int32)

    tile, hwp = _choose_tile(hw, B, max_tile=max_tile)
    if hwp != hw:
        x = jnp.pad(x, ((0, 0), (0, 0), (0, hwp - hw)))
        lab = jnp.pad(lab, ((0, 0), (0, 0), (0, hwp - hw)), constant_values=-1)

    # Weight prep (tiny, fused by XLA).
    w1t = jnp.transpose(params["w1"], (0, 2, 1)).reshape(classes * features, C)
    b1c = params["b1"].reshape(classes * features, 1)
    w1a = jnp.concatenate([w1t, b1c], axis=1)                 # (classes*F, C+1)

    w2t = jnp.transpose(params["w2"], (0, 2, 1))              # (classes, hs, F)
    eye = jnp.eye(classes, dtype=w2t.dtype)
    w2bd = (eye[:, None, :, None] * w2t[:, :, None, :]).reshape(
        classes * hs, classes * features)                     # block-diagonal
    b2f = params["b2"].reshape(classes * hs, 1)

    n_tiles = hwp // tile
    n_chunks = tile // _CHUNK

    # Generation-aware VMEM budget (footprint is small thanks to chunking, but
    # set the limit explicitly so large tiles are safe on v5e's 16 MiB default
    # scope and stay well under v7x's 64 MiB physical VMEM).
    per_lane_bytes = (C + 1) * 4 + 4 + hs * 4
    io_bytes = 2 * per_lane_bytes * tile                      # double-buffered I/O
    w_bytes = 4 * (w1a.size + w2bd.size + b2f.size)
    scratch_bytes = 8 * classes * features * _CHUNK * 4       # generous h/y headroom
    vmem_limit = int(min(48 * 2**20,
                         max(32 * 2**20, io_bytes + w_bytes + scratch_bytes + (4 << 20))))

    flops = 2 * B * hwp * (classes * features * (C + 1)
                           + (classes * hs) * (classes * features))
    bytes_accessed = B * hwp * per_lane_bytes + w_bytes
    cost = pl.CostEstimate(flops=int(flops), transcendentals=0,
                           bytes_accessed=int(bytes_accessed))

    out = pl.pallas_call(
        _make_kernel(classes, features, hs, _CHUNK, n_chunks),
        out_shape=jax.ShapeDtypeStruct((B, hs, hwp), jnp.float32),
        grid_spec=pltpu.PrefetchScalarGridSpec(
            num_scalar_prefetch=0,
            grid=(B, n_tiles),
            in_specs=[
                pl.BlockSpec((None, C + 1, tile), lambda b, i: (b, 0, i)),
                pl.BlockSpec((None, 1, tile), lambda b, i: (b, 0, i)),
                pl.BlockSpec((classes * features, C + 1), lambda b, i: (0, 0)),
                pl.BlockSpec((classes * hs, classes * features), lambda b, i: (0, 0)),
                pl.BlockSpec((classes * hs, 1), lambda b, i: (0, 0)),
            ],
            out_specs=pl.BlockSpec((None, hs, tile), lambda b, i: (b, 0, i)),
        ),
        compiler_params=pltpu.CompilerParams(
            dimension_semantics=("parallel", "parallel"),
            vmem_limit_bytes=vmem_limit,
        ),
        cost_estimate=cost,
    )(x, lab, w1a, w2bd, b2f)

    if hwp != hw:
        out = out[:, :, :hw]
    return out.reshape(B, hs, H, W)                           # already NCHW


# -----------------------------------------------------------------------------
# Deterministic parameter init (mimics nn.Linear's U(-1/sqrt(fan_in), ...)),
# stored as (classes, in, out) like the reference MLPs.
# -----------------------------------------------------------------------------
def init_params(key, *, classes, ms_channels, hs_channels, features):
    k1, k2, k3, k4 = jax.random.split(key, 4)
    s1 = 1.0 / jnp.sqrt(ms_channels)
    s2 = 1.0 / jnp.sqrt(features)
    return {
        "w1": jax.random.uniform(k1, (classes, ms_channels, features),
                                 jnp.float32, -s1, s1),
        "b1": jax.random.uniform(k2, (classes, features), jnp.float32, -s1, s1),
        "w2": jax.random.uniform(k3, (classes, features, hs_channels),
                                 jnp.float32, -s2, s2),
        "b2": jax.random.uniform(k4, (classes, hs_channels), jnp.float32, -s2, s2),
    }


def clusters_up_reference(image, clusters, params, *, classes):
    B, C, H, W = image.shape
    hs = params["w2"].shape[-1]
    x = jnp.transpose(image, (0, 2, 3, 1)).reshape(-1, C)
    lab = clusters.reshape(-1)
    out = jnp.zeros((x.shape[0], hs), jnp.float32)
    for c in range(classes):
        h = jax.nn.relu(x @ params["w1"][c] + params["b1"][c])
        y = jax.nn.relu(h @ params["w2"][c] + params["b2"][c])
        out = jnp.where((lab == c)[:, None], y, out)
    return jnp.transpose(out.reshape(B, H, W, hs), (0, 3, 1, 2))


if __name__ == "__main__":
    B, ms_channels, hs_channels, H, W = 2, 4, 8, 16, 16
    classes, features = 5, 64

    key = jax.random.PRNGKey(0)
    k_img, k_lab, k_par = jax.random.split(key, 3)

    image = jax.random.normal(k_img, (B, ms_channels, H, W), jnp.float32)
    clusters = jax.random.randint(k_lab, (B, 1, H, W), 0, classes, jnp.int32)
    params = init_params(k_par, classes=classes, ms_channels=ms_channels,
                         hs_channels=hs_channels, features=features)

    run = jax.jit(functools.partial(clusters_up_pallas, classes=classes))
    out = jax.block_until_ready(run(image, clusters, params))

    ref = clusters_up_reference(image, clusters, params, classes=classes)
    assert out.shape == (B, hs_channels, H, W)
    assert jnp.allclose(out, ref, atol=1e-5, rtol=1e-5)

    print("KERNEL_OK")
</pallas_src>

<mosaic_0001>
module attributes {stable_mosaic.version = 11 : i64} {
  func.func @kernel(%arg0: i32, %arg1: i32, %arg2: memref<1x5x256xf32, #tpu.memory_space<vmem>>, %arg3: memref<1x1x256xi32, #tpu.memory_space<vmem>>, %arg4: memref<320x5xf32, #tpu.memory_space<vmem>>, %arg5: memref<40x320xf32, #tpu.memory_space<vmem>>, %arg6: memref<40x1xf32, #tpu.memory_space<vmem>>, %arg7: memref<1x8x256xf32, #tpu.memory_space<vmem>>) attributes {dimension_semantics = [#tpu.dimension_semantics<parallel>, #tpu.dimension_semantics<parallel>], iteration_bounds = array<i64: 2, 1>, scalar_prefetch = 0 : i64, scratch_operands = 0 : i64, tpu.core_type = #tpu.core_type<tc>, window_params = [{transform_indices = @transform_0, window_bounds = array<i64: 1, 5, 256>}, {transform_indices = @transform_1, window_bounds = array<i64: 1, 1, 256>}, {pipeline_mode = #tpu.pipeline_mode<synchronous>, transform_indices = @transform_2, window_bounds = array<i64: 320, 5>}, {pipeline_mode = #tpu.pipeline_mode<synchronous>, transform_indices = @transform_3, window_bounds = array<i64: 40, 320>}, {pipeline_mode = #tpu.pipeline_mode<synchronous>, transform_indices = @transform_4, window_bounds = array<i64: 40, 1>}, {transform_indices = @transform_5, window_bounds = array<i64: 1, 8, 256>}]} {
    %c0 = arith.constant 0 : index
    %c0_0 = arith.constant 0 : index
    %0 = vector.load %arg4[%c0, %c0_0] : memref<320x5xf32, #tpu.memory_space<vmem>>, vector<320x5xf32>
    %c0_1 = arith.constant 0 : index
    %c0_2 = arith.constant 0 : index
    %1 = vector.load %arg5[%c0_1, %c0_2] : memref<40x320xf32, #tpu.memory_space<vmem>>, vector<40x320xf32>
    %c0_3 = arith.constant 0 : index
    %c0_4 = arith.constant 0 : index
    %2 = vector.load %arg6[%c0_3, %c0_4] : memref<40x1xf32, #tpu.memory_space<vmem>>, vector<40x1xf32>
    %c0_i32 = arith.constant 0 : i32
    %c256_i32 = arith.constant 256 : i32
    %3 = arith.muli %c0_i32, %c256_i32 : i32
    %4 = tpu.assume_multiple %3, 256 : i32
    %c0_5 = arith.constant 0 : index
    %c0_6 = arith.constant 0 : index
    %5 = arith.index_cast %4 : i32 to index
    %6 = vector.load %arg2[%c0_5, %c0_6, %5] : memref<1x5x256xf32, #tpu.memory_space<vmem>>, vector<1x5x256xf32>
    %7 = vector.shape_cast %6 : vector<1x5x256xf32> to vector<5x256xf32>
    %c0_7 = arith.constant 0 : index
    %c0_8 = arith.constant 0 : index
    %8 = arith.index_cast %4 : i32 to index
    %9 = vector.load %arg3[%c0_7, %c0_8, %8] : memref<1x1x256xi32, #tpu.memory_space<vmem>>, vector<1x1x256xi32>
    %10 = vector.shape_cast %9 : vector<1x1x256xi32> to vector<1x256xi32>
    %cst = arith.constant dense<0.000000e+00> : vector<320x256xf32>
    %11 = tpu.matmul %0, %7, %cst {dimension_numbers = #tpu.dot_dimension_numbers<[1], [0], [0], [1], [0, 0, 1, 1], [], []>} : vector<320x5xf32>, vector<5x256xf32>, vector<320x256xf32> -> vector<320x256xf32>
    %cst_9 = arith.constant 0.000000e+00 : f32
    %12 = vector.broadcast %cst_9 : f32 to vector<320x256xf32>
    %13 = arith.maximumf %11, %12 : vector<320x256xf32>
    %cst_10 = arith.constant dense<0.000000e+00> : vector<40x256xf32>
    %14 = tpu.matmul %1, %13, %cst_10 {dimension_numbers = #tpu.dot_dimension_numbers<[1], [0], [0], [1], [0, 0, 1, 1], [], []>} : vector<40x320xf32>, vector<320x256xf32>, vector<40x256xf32> -> vector<40x256xf32>
    %15 = vector.broadcast %2 : vector<40x1xf32> to vector<40x256xf32>
    %16 = arith.addf %14, %15 : vector<40x256xf32>
    %cst_11 = arith.constant 0.000000e+00 : f32
    %17 = vector.broadcast %cst_11 : f32 to vector<40x256xf32>
    %18 = arith.maximumf %16, %17 : vector<40x256xf32>
    %cst_12 = arith.constant 0.000000e+00 : f32
    %19 = vector.broadcast %cst_12 : f32 to vector<8x256xf32>
    %c0_i32_13 = arith.constant 0 : i32
    %20 = vector.broadcast %c0_i32_13 : i32 to vector<1x256xi32>
    %21 = arith.cmpi eq, %10, %20 : vector<1x256xi32>
    %22 = vector.extract_strided_slice %18 {offsets = [0, 0], sizes = [8, 256], strides = [1, 1]} : vector<40x256xf32> to vector<8x256xf32>
    %23 = vector.shape_cast %21 : vector<1x256xi1> to vector<1x256xi1>
    %24 = vector.broadcast %23 : vector<1x256xi1> to vector<8x256xi1>
    %25 = arith.select %24, %22, %19 : vector<8x256xi1>, vector<8x256xf32>
    %c1_i32 = arith.constant 1 : i32
    %26 = vector.broadcast %c1_i32 : i32 to vector<1x256xi32>
    %27 = arith.cmpi eq, %10, %26 : vector<1x256xi32>
    %28 = vector.extract_strided_slice %18 {offsets = [8, 0], sizes = [8, 256], strides = [1, 1]} : vector<40x256xf32> to vector<8x256xf32>
    %29 = vector.shape_cast %27 : vector<1x256xi1> to vector<1x256xi1>
    %30 = vector.broadcast %29 : vector<1x256xi1> to vector<8x256xi1>
    %31 = arith.select %30, %28, %25 : vector<8x256xi1>, vector<8x256xf32>
    %c2_i32 = arith.constant 2 : i32
    %32 = vector.broadcast %c2_i32 : i32 to vector<1x256xi32>
    %33 = arith.cmpi eq, %10, %32 : vector<1x256xi32>
    %34 = vector.extract_strided_slice %18 {offsets = [16, 0], sizes = [8, 256], strides = [1, 1]} : vector<40x256xf32> to vector<8x256xf32>
    %35 = vector.shape_cast %33 : vector<1x256xi1> to vector<1x256xi1>
    %36 = vector.broadcast %35 : vector<1x256xi1> to vector<8x256xi1>
    %37 = arith.select %36, %34, %31 : vector<8x256xi1>, vector<8x256xf32>
    %c3_i32 = arith.constant 3 : i32
    %38 = vector.broadcast %c3_i32 : i32 to vector<1x256xi32>
    %39 = arith.cmpi eq, %10, %38 : vector<1x256xi32>
    %40 = vector.extract_strided_slice %18 {offsets = [24, 0], sizes = [8, 256], strides = [1, 1]} : vector<40x256xf32> to vector<8x256xf32>
    %41 = vector.shape_cast %39 : vector<1x256xi1> to vector<1x256xi1>
    %42 = vector.broadcast %41 : vector<1x256xi1> to vector<8x256xi1>
    %43 = arith.select %42, %40, %37 : vector<8x256xi1>, vector<8x256xf32>
    %c4_i32 = arith.constant 4 : i32
    %44 = vector.broadcast %c4_i32 : i32 to vector<1x256xi32>
    %45 = arith.cmpi eq, %10, %44 : vector<1x256xi32>
    %46 = vector.extract_strided_slice %18 {offsets = [32, 0], sizes = [8, 256], strides = [1, 1]} : vector<40x256xf32> to vector<8x256xf32>
    %47 = vector.shape_cast %45 : vector<1x256xi1> to vector<1x256xi1>
    %48 = vector.broadcast %47 : vector<1x256xi1> to vector<8x256xi1>
    %49 = arith.select %48, %46, %43 : vector<8x256xi1>, vector<8x256xf32>
    %c0_14 = arith.constant 0 : index
    %c0_15 = arith.constant 0 : index
    %50 = arith.index_cast %4 : i32 to index
    %51 = vector.load %arg7[%c0_14, %c0_15, %50] : memref<1x8x256xf32, #tpu.memory_space<vmem>>, vector<1x8x256xf32>
    %52 = vector.shape_cast %51 : vector<1x8x256xf32> to vector<8x256xf32>
    %53 = vector.shape_cast %49 : vector<8x256xf32> to vector<1x8x256xf32>
    tpu.vector_store %arg7[%c0_14, %c0_15, %50], %53 {strides = array<i32>} : memref<1x8x256xf32, #tpu.memory_space<vmem>>, vector<1x8x256xf32>,
    %c1_i32_16 = arith.constant 1 : i32
    return
  }
  func.func @transform_0(%arg0: i32, %arg1: i32) -> (i32, i32, i32) {
    %c0_i32 = arith.constant 0 : i32
    %c0_i32_0 = arith.constant 0 : i32
    return %arg0, %c0_i32, %arg1 : i32, i32, i32
  }
  func.func @transform_1(%arg0: i32, %arg1: i32) -> (i32, i32, i32) {
    %c0_i32 = arith.constant 0 : i32
    %c0_i32_0 = arith.constant 0 : i32
    return %arg0, %c0_i32, %arg1 : i32, i32, i32
  }
  func.func @transform_2(%arg0: i32, %arg1: i32) -> (i32, i32) {
    %c0_i32 = arith.constant 0 : i32
    %c0_i32_0 = arith.constant 0 : i32
    %c0_i32_1 = arith.constant 0 : i32
    return %c0_i32, %c0_i32_0 : i32, i32
  }
  func.func @transform_3(%arg0: i32, %arg1: i32) -> (i32, i32) {
    %c0_i32 = arith.constant 0 : i32
    %c0_i32_0 = arith.constant 0 : i32
    %c0_i32_1 = arith.constant 0 : i32
    return %c0_i32, %c0_i32_0 : i32, i32
  }
  func.func @transform_4(%arg0: i32, %arg1: i32) -> (i32, i32) {
    %c0_i32 = arith.constant 0 : i32
    %c0_i32_0 = arith.constant 0 : i32
    %c0_i32_1 = arith.constant 0 : i32
    return %c0_i32, %c0_i32_0 : i32, i32
  }
  func.func @transform_5(%arg0: i32, %arg1: i32) -> (i32, i32, i32) {
    %c0_i32 = arith.constant 0 : i32
    %c0_i32_0 = arith.constant 0 : i32
    return %arg0, %c0_i32, %arg1 : i32, i32, i32
  }
}

</mosaic_0001>

<llo_original>
// kernel: clusters_up_pallas.1
$region0: #{clusters_up_pallas.1}
  #allocation0 [shape = 'u32[]', space=smem, size = 0x4, offset = 0x4, fixed_abs, tag = 'smem constant byte address 0x4 - core index']
  #allocation1 [shape = 'u32[144,128]{1,0:T(1,128)}', space=vmem, size = 0x12000, scoped, tag = 'internal scratch']
  %s0 = inlined_call_operand.vmem [shape: f32[2,5,256], index: 0, kind: input, shape index: {}]
  %s1 = inlined_call_operand.vmem [shape: s32[2,1,256], index: 1, kind: input, shape index: {}]
  %s2 = inlined_call_operand.vmem [shape: f32[320,5], index: 2, kind: input, shape index: {}]
  %s3 = inlined_call_operand.vmem [shape: f32[40,320], index: 3, kind: input, shape index: {}]
  %s4 = inlined_call_operand.vmem [shape: f32[40,1], index: 4, kind: input, shape index: {}]
  %s5 = inlined_call_operand.vmem [shape: f32[2,8,256], index: 5, kind: output, shape index: {}]
  %s6 = sld [smem:[#allocation0]]
  $region53: #{clusters_up_pallas.1} parent=0
    _
  %s8 = ssub.s32 1, %s6
  %s9 = scalar_select 0, %s8, %s6
  loop: start=0, step=1, limit=4
  $region2: #{clusters_up_pallas.1} parent=0 // loop_pre_header
    _
  $region3: #{clusters_up_pallas.1} parent=0 // loop_header
    %s11 = sphi 0, %s15
    %p12 = scmp.ge.s32.totalorder %s11, 4
    %s18 = sphi 0, %s30
    %s19 = sphi 0, %s26
    %s20 = sphi 0, %s18
    %s21 = sphi 0, %s19
    %s22 = sphi 0, %s20
    %s23 = sphi 0, %s21
    %s35 = sphi 0, %s37
    %s38 = sphi 0, %s35
    %s39 = sphi 0, %s38
    %s55 = sphi 0, %s39
    %s63 = sphi 0, %s65
    %s66 = sphi 0, %s63
    %s67 = sphi 0, %s66
    %s83 = sphi 0, %s67
    %s87 = sphi 0, %s87
    %s89 = sphi 0, %s87
    %s90 = sphi 0, %s89
    %s104 = sphi 0, %s90
    %s108 = sphi 0, %s108
    %s110 = sphi 0, %s108
    %s111 = sphi 0, %s110
    %s125 = sphi 0, %s111
    %s129 = sphi 0, %s129
    %s131 = sphi 0, %s129
    %s132 = sphi 0, %s131
    %s146 = sphi 0, %s132
    %s154 = sphi 0, %s156
    %s157 = sphi 0, %s154
    %s158 = sphi 0, %s157
    %s174 = sphi 0, %s158
  $region4: #{clusters_up_pallas.1} parent=0 // loop_header_branch
    %14 = sbr.rel (%p12) target = $region8
  $region5: #{clusters_up_pallas.1} parent=0 // loop_body
    %s16 = ssub.s32 %s11, 1
    %s17 = ssub.s32 %s11, 2
    %s24 = sadd.s32 1, %s19
    %p25 = scmp.ge.s32.totalorder %s24, 1
    %s26 = scalar_select %p25, 0, %s24
    %s27 = sadd.s32 1, %s18
    %s28 = scalar_select %p25, %s27, %s18
    %p29 = scmp.ge.s32.totalorder %s28, 2
    %s30 = scalar_select %p29, 0, %s28
    %s31 = ssub.s32 %s18, %s30
    %s32 = ssub.s32 %s19, %s26
    %s33 = sor.u32 %s31, %s32
    %p34 = scmp.eq.s32.totalorder %s33, 0
    %s36 = sadd.s32 %s35, 1
    %s37 = scalar_select %p34, %s35, %s36
    %p40 = pneg %p34
    %p41 = scmp.eq.s32.totalorder %s11, 1
    %p42 = por %p40, %p41
    %p43 = scmp.ne.s32.totalorder %s35, %s38
    %p44 = scmp.eq.s32.totalorder %s11, 0
    %p45 = por %p43, %p44
    %p46 = scmp.ne.s32.totalorder %s35, %s38
    %p47 = scmp.eq.s32.totalorder %s16, 1
    %p48 = por %p46, %p47
    %p49 = scmp.ne.s32.totalorder %s38, %s39
    %p50 = scmp.eq.s32.totalorder %s16, 0
    %p51 = por %p49, %p50
    %p52 = scmp.ne.s32.totalorder %s38, %s39
    %p53 = scmp.eq.s32.totalorder %s17, 1
    %p54 = por %p52, %p53
    %p56 = scmp.ne.s32.totalorder %s39, %s55
    %p57 = scmp.eq.s32.totalorder %s17, 0
    %p58 = por %p56, %p57
    %s59 = ssub.s32 %s18, %s30
    %s60 = ssub.s32 %s19, %s26
    %s61 = sor.u32 %s59, %s60
    %p62 = scmp.eq.s32.totalorder %s61, 0
    %s64 = sadd.s32 %s63, 1
    %s65 = scalar_select %p62, %s63, %s64
    %p68 = pneg %p62
    %p69 = scmp.eq.s32.totalorder %s11, 1
    %p70 = por %p68, %p69
    %p71 = scmp.ne.s32.totalorder %s63, %s66
    %p72 = scmp.eq.s32.totalorder %s11, 0
    %p73 = por %p71, %p72
    %p74 = scmp.ne.s32.totalorder %s63, %s66
    %p75 = scmp.eq.s32.totalorder %s16, 1
    %p76 = por %p74, %p75
    %p77 = scmp.ne.s32.totalorder %s66, %s67
    %p78 = scmp.eq.s32.totalorder %s16, 0
    %p79 = por %p77, %p78
    %p80 = scmp.ne.s32.totalorder %s66, %s67
    %p81 = scmp.eq.s32.totalorder %s17, 1
    %p82 = por %p80, %p81
    %p84 = scmp.ne.s32.totalorder %s67, %s83
    %p85 = scmp.eq.s32.totalorder %s17, 0
    %p86 = por %p84, %p85
    %s88 = sadd.s32 %s87, 1
    %p91 = scmp.eq.s32.totalorder %s11, 1
    %p92 = scmp.ne.s32.totalorder %s87, %s89
    %p93 = scmp.eq.s32.totalorder %s11, 0
    %p94 = por %p92, %p93
    %p95 = scmp.ne.s32.totalorder %s87, %s89
    %p96 = scmp.eq.s32.totalorder %s16, 1
    %p97 = por %p95, %p96
    %p98 = scmp.ne.s32.totalorder %s89, %s90
    %p99 = scmp.eq.s32.totalorder %s16, 0
    %p100 = por %p98, %p99
    %p101 = scmp.ne.s32.totalorder %s89, %s90
    %p102 = scmp.eq.s32.totalorder %s17, 1
    %p103 = por %p101, %p102
    %p105 = scmp.ne.s32.totalorder %s90, %s104
    %p106 = scmp.eq.s32.totalorder %s17, 0
    %p107 = por %p105, %p106
    %s109 = sadd.s32 %s108, 1
    %p112 = scmp.eq.s32.totalorder %s11, 1
    %p113 = scmp.ne.s32.totalorder %s108, %s110
    %p114 = scmp.eq.s32.totalorder %s11, 0
    %p115 = por %p113, %p114
    %p116 = scmp.ne.s32.totalorder %s108, %s110
    %p117 = scmp.eq.s32.totalorder %s16, 1
    %p118 = por %p116, %p117
    %p119 = scmp.ne.s32.totalorder %s110, %s111
    %p120 = scmp.eq.s32.totalorder %s16, 0
    %p121 = por %p119, %p120
    %p122 = scmp.ne.s32.totalorder %s110, %s111
    %p123 = scmp.eq.s32.totalorder %s17, 1
    %p124 = por %p122, %p123
    %p126 = scmp.ne.s32.totalorder %s111, %s125
    %p127 = scmp.eq.s32.totalorder %s17, 0
    %p128 = por %p126, %p127
    %s130 = sadd.s32 %s129, 1
    %p133 = scmp.eq.s32.totalorder %s11, 1
    %p134 = scmp.ne.s32.totalorder %s129, %s131
    %p135 = scmp.eq.s32.totalorder %s11, 0
    %p136 = por %p134, %p135
    %p137 = scmp.ne.s32.totalorder %s129, %s131
    %p138 = scmp.eq.s32.totalorder %s16, 1
    %p139 = por %p137, %p138
    %p140 = scmp.ne.s32.totalorder %s131, %s132
    %p141 = scmp.eq.s32.totalorder %s16, 0
    %p142 = por %p140, %p141
    %p143 = scmp.ne.s32.totalorder %s131, %s132
    %p144 = scmp.eq.s32.totalorder %s17, 1
    %p145 = por %p143, %p144
    %p147 = scmp.ne.s32.totalorder %s132, %s146
    %p148 = scmp.eq.s32.totalorder %s17, 0
    %p149 = por %p147, %p148
    %s150 = ssub.s32 %s18, %s30
    %s151 = ssub.s32 %s19, %s26
    %s152 = sor.u32 %s150, %s151
    %p153 = scmp.eq.s32.totalorder %s152, 0
    %s155 = sadd.s32 %s154, 1
    %s156 = scalar_select %p153, %s154, %s155
    %p159 = pneg %p153
    %p160 = scmp.eq.s32.totalorder %s11, 1
    %p161 = por %p159, %p160
    %p162 = scmp.ne.s32.totalorder %s154, %s157
    %p163 = scmp.eq.s32.totalorder %s11, 0
    %p164 = por %p162, %p163
    %p165 = scmp.ne.s32.totalorder %s154, %s157
    %p166 = scmp.eq.s32.totalorder %s16, 1
    %p167 = por %p165, %p166
    %p168 = scmp.ne.s32.totalorder %s157, %s158
    %p169 = scmp.eq.s32.totalorder %s16, 0
    %p170 = por %p168, %p169
    %p171 = scmp.ne.s32.totalorder %s157, %s158
    %p172 = scmp.eq.s32.totalorder %s17, 1
    %p173 = por %p171, %p172
    %p175 = scmp.ne.s32.totalorder %s158, %s174
    %p176 = scmp.eq.s32.totalorder %s17, 0
    %p177 = por %p175, %p176
    %p178 = scmp.le.s32.totalorder 1, %s11
    %p179 = scmp.lt.s32.totalorder %s11, 3
    %p180 = pnand %p178, %p179
    %p181 = pneg %p180
    // Predicated region
    $region9: #{clusters_up_pallas.1} parent=5 // pred_check
      _
    $region10: #{clusters_up_pallas.1} parent=5 // pred_check_branch
      %183 = sbr.rel (%p180) target = $region12
    $region11: #{clusters_up_pallas.1} parent=5 // pred_region
      %s184 = ssub.s32 %s11, 1
      // Predicated region
      $region13: #{clusters_up_pallas.1} parent=11 // pred_check
        %p185 = pneg %p100
      $region14: #{clusters_up_pallas.1} parent=11 // pred_check_branch
        %187 = sbr.rel (%p185) target = $region16
      $region15: #{clusters_up_pallas.1} parent=11 // pred_region
        _
      $region16: #{clusters_up_pallas.1} parent=11 // pred_fallthru
        _
      // Predicated region
      $region17: #{clusters_up_pallas.1} parent=11 // pred_check
        %p188 = pneg %p121
      $region18: #{clusters_up_pallas.1} parent=11 // pred_check_branch
        %190 = sbr.rel (%p188) target = $region20
      $region19: #{clusters_up_pallas.1} parent=11 // pred_region
        _
      $region20: #{clusters_up_pallas.1} parent=11 // pred_fallthru
        _
      // Predicated region
      $region21: #{clusters_up_pallas.1} parent=11 // pred_check
        %p191 = pneg %p142
      $region22: #{clusters_up_pallas.1} parent=11 // pred_check_branch
        %193 = sbr.rel (%p191) target = $region24
      $region23: #{clusters_up_pallas.1} parent=11 // pred_region
        _
      $region24: #{clusters_up_pallas.1} parent=11 // pred_fallthru
        _
    $region12: #{clusters_up_pallas.1} parent=5 // pred_fallthru
      _
    %p194 = scmp.lt.s32.totalorder %s11, 2
    // Predicated region
    $region25: #{clusters_up_pallas.1} parent=5 // pred_check
      %p195 = pneg %p194
    $region26: #{clusters_up_pallas.1} parent=5 // pred_check_branch
      %197 = sbr.rel (%p195) target = $region28
    $region27: #{clusters_up_pallas.1} parent=5 // pred_region
      // Predicated region
      $region29: #{clusters_up_pallas.1} parent=27 // pred_check
        %p198 = pneg %p45
      $region30: #{clusters_up_pallas.1} parent=27 // pred_check_branch
        %200 = sbr.rel (%p198) target = $region32
      $region31: #{clusters_up_pallas.1} parent=27 // pred_region
        %s201 = smul.u32 2, %s19
        %p202 = scmp.lt.s32.totalorder %s18, 1
        %s203 = scalar_select %p202, %s18, 1
        %p204 = scmp.lt.s32.totalorder %s201, 1
        %s205 = scalar_select %p204, %s201, 1
        %s206 = smul.addr %s203, 2
        %s207 = sadd.s32 %s205, %s206
        %s208 = smul.addr %s207, 8
        %s209 = scalar_lea.vmem %s0, %s208
        %s210 = smul.u32 2, %s19
      $region32: #{clusters_up_pallas.1} parent=27 // pred_fallthru
        _
      // Predicated region
      $region33: #{clusters_up_pallas.1} parent=27 // pred_check
        %p211 = pneg %p73
      $region34: #{clusters_up_pallas.1} parent=27 // pred_check_branch
        %213 = sbr.rel (%p211) target = $region36
      $region35: #{clusters_up_pallas.1} parent=27 // pred_region
        %s214 = smul.u32 2, %s19
        %p215 = scmp.lt.s32.totalorder %s18, 1
        %s216 = scalar_select %p215, %s18, 1
        %p217 = scmp.lt.s32.totalorder %s214, 1
        %s218 = scalar_select %p217, %s214, 1
        %s219 = smul.addr %s216, 2
        %s220 = sadd.s32 %s218, %s219
        %s221 = scalar_lea.vmem %s1, %s220
        %s222 = smul.u32 2, %s19
      $region36: #{clusters_up_pallas.1} parent=27 // pred_fallthru
        _
    $region28: #{clusters_up_pallas.1} parent=5 // pred_fallthru
      _
    %p223 = scmp.le.s32.totalorder 1, %s11
    %p224 = scmp.lt.s32.totalorder %s11, 3
    %p225 = pnand %p223, %p224
    %p226 = pneg %p225
    // Predicated region
    $region37: #{clusters_up_pallas.1} parent=5 // pred_check
      _
    $region38: #{clusters_up_pallas.1} parent=5 // pred_check_branch
      %228 = sbr.rel (%p225) target = $region40
    $region39: #{clusters_up_pallas.1} parent=5 // pred_region
      %s229 = ssub.s32 %s11, 1
      %s230 = smul.u32 2, %s21
      %p231 = scmp.lt.s32.totalorder %s20, 1
      %s232 = scalar_select %p231, %s20, 1
      %p233 = scmp.lt.s32.totalorder %s230, 1
      %s234 = scalar_select %p233, %s230, 1
      %s235 = smul.addr %s232, 2
      %s236 = sadd.s32 %s234, %s235
      %s237 = smul.addr %s236, 8
      %s238 = scalar_lea.vmem %s0, %s237
      %p239 = pneg %p51
      %p240 = pneg %p48
      %s241 = smul.u32 2, %s21
      %p242 = scmp.lt.s32.totalorder %s20, 1
      %s243 = scalar_select %p242, %s20, 1
      %p244 = scmp.lt.s32.totalorder %s241, 1
      %s245 = scalar_select %p244, %s241, 1
      %s246 = smul.addr %s243, 2
      %s247 = sadd.s32 %s245, %s246
      %s248 = scalar_lea.vmem %s1, %s247
      %p249 = pneg %p79
      %p250 = pneg %p76
      %p251 = pneg %p100
      %p252 = pneg %p97
      %p253 = pneg %p121
      %p254 = pneg %p118
      %p255 = pneg %p142
      %p256 = pneg %p139
      %p257 = pneg %p170
      %p258 = pneg %p167
      %s259 = smul.u32 2, %s21
      %p260 = scmp.lt.s32.totalorder %s20, 1
      %s261 = scalar_select %p260, %s20, 1
      %p262 = scmp.lt.s32.totalorder %s259, 1
      %s263 = scalar_select %p262, %s259, 1
      %s264 = smul.addr %s261, 2
      %s265 = sadd.s32 %s263, %s264
      %s266 = smul.addr %s265, 8
      %s267 = scalar_lea.vmem %s5, %s266
      %s268 = smul.u32 2, %s21
      %p269 = scmp.lt.s32.totalorder %s20, 1
      %s270 = scalar_select %p269, %s20, 1
      %p271 = scmp.lt.s32.totalorder %s268, 1
      %s272 = scalar_select %p271, %s268, 1
      %s273 = smul.addr %s270, 2
      %s274 = sadd.s32 %s272, %s273
      %s275 = smul.addr %s274, 8
      %s276 = scalar_lea.vmem %s0, %s275
      %s277 = smul.u32 2, %s21
      %s278 = smul.u32 2, %s21
      %p279 = scmp.lt.s32.totalorder %s20, 1
      %s280 = scalar_select %p279, %s20, 1
      %p281 = scmp.lt.s32.totalorder %s278, 1
      %s282 = scalar_select %p281, %s278, 1
      %s283 = smul.addr %s280, 2
      %s284 = sadd.s32 %s282, %s283
      %s285 = scalar_lea.vmem %s1, %s284
      %s286 = smul.u32 2, %s21
      %s287 = smul.u32 2, %s21
      %p288 = scmp.lt.s32.totalorder %s20, 1
      %s289 = scalar_select %p288, %s20, 1
      %p290 = scmp.lt.s32.totalorder %s287, 1
      %s291 = scalar_select %p290, %s287, 1
      %s292 = smul.addr %s289, 2
      %s293 = sadd.s32 %s291, %s292
      %s294 = smul.addr %s293, 8
      %s295 = scalar_lea.vmem %s5, %s294
      %s296 = smul.u32 2, %s21
      %v297 = vld [vmem:[%s2] sm:$0xff]
      %v298 = vld [vmem:[%s2 + $0x8] sm:$0xff]
      %v299 = vld [vmem:[%s2 + $0x10] sm:$0xff]
      %v300 = vld [vmem:[%s2 + $0x18] sm:$0xff]
      %v301 = vld [vmem:[%s2 + $0x20] sm:$0xff]
      %v302 = vld [vmem:[%s2 + $0x28] sm:$0xff]
      %v303 = vld [vmem:[%s2 + $0x30] sm:$0xff]
      %v304 = vld [vmem:[%s2 + $0x38] sm:$0xff]
      %v305 = vld [vmem:[%s2 + $0x40] sm:$0xff]
      %v306 = vld [vmem:[%s2 + $0x48] sm:$0xff]
      %v307 = vld [vmem:[%s2 + $0x50] sm:$0xff]
      %v308 = vld [vmem:[%s2 + $0x58] sm:$0xff]
      %v309 = vld [vmem:[%s2 + $0x60] sm:$0xff]
      %v310 = vld [vmem:[%s2 + $0x68] sm:$0xff]
      %v311 = vld [vmem:[%s2 + $0x70] sm:$0xff]
      %v312 = vld [vmem:[%s2 + $0x78] sm:$0xff]
      %v313 = vld [vmem:[%s2 + $0x80] sm:$0xff]
      %v314 = vld [vmem:[%s2 + $0x88] sm:$0xff]
      %v315 = vld [vmem:[%s2 + $0x90] sm:$0xff]
      %v316 = vld [vmem:[%s2 + $0x98] sm:$0xff]
      %v317 = vld [vmem:[%s2 + $0xa0] sm:$0xff]
      %v318 = vld [vmem:[%s2 + $0xa8] sm:$0xff]
      %v319 = vld [vmem:[%s2 + $0xb0] sm:$0xff]
      %v320 = vld [vmem:[%s2 + $0xb8] sm:$0xff]
      %v321 = vld [vmem:[%s2 + $0xc0] sm:$0xff]
      %v322 = vld [vmem:[%s2 + $0xc8] sm:$0xff]
      %v323 = vld [vmem:[%s2 + $0xd0] sm:$0xff]
      %v324 = vld [vmem:[%s2 + $0xd8] sm:$0xff]
      %v325 = vld [vmem:[%s2 + $0xe0] sm:$0xff]
      %v326 = vld [vmem:[%s2 + $0xe8] sm:$0xff]
      %v327 = vld [vmem:[%s2 + $0xf0] sm:$0xff]
      %v328 = vld [vmem:[%s2 + $0xf8] sm:$0xff]
      %v329 = vld [vmem:[%s2 + $0x100] sm:$0xff]
      %v330 = vld [vmem:[%s2 + $0x108] sm:$0xff]
      %v331 = vld [vmem:[%s2 + $0x110] sm:$0xff]
      %v332 = vld [vmem:[%s2 + $0x118] sm:$0xff]
      %v333 = vld [vmem:[%s2 + $0x120] sm:$0xff]
      %v334 = vld [vmem:[%s2 + $0x128] sm:$0xff]
      %v335 = vld [vmem:[%s2 + $0x130] sm:$0xff]
      %v336 = vld [vmem:[%s2 + $0x138] sm:$0xff]
      %v337 = vld [vmem:[%s3] sm:$0xff]
      %v338 = vld [vmem:[%s3 + $0x8] sm:$0xff]
      %v339 = vld [vmem:[%s3 + $0x10] sm:$0xff]
      %v340 = vld [vmem:[%s3 + $0x18] sm:$0xff]
      %v341 = vld [vmem:[%s3 + $0x20] sm:$0xff]
      %v342 = vld [vmem:[%s3 + $0x28] sm:$0xff]
      %v343 = vld [vmem:[%s3 + $0x30] sm:$0xff]
      %v344 = vld [vmem:[%s3 + $0x38] sm:$0xff]
      %v345 = vld [vmem:[%s3 + $0x40] sm:$0xff]
      %v346 = vld [vmem:[%s3 + $0x48] sm:$0xff]
      %v347 = vld [vmem:[%s3 + $0x50] sm:$0xff]
      %v348 = vld [vmem:[%s3 + $0x58] sm:$0xff]
      %v349 = vld [vmem:[%s3 + $0x60] sm:$0xff]
      %v350 = vld [vmem:[%s3 + $0x68] sm:$0xff]
      %v351 = vld [vmem:[%s3 + $0x70] sm:$0xff]
      %v352 = vld [vmem:[%s4] sm:$0xff]
      %v353 = vld [vmem:[%s4 + $0x8] sm:$0xff]
      %v354 = vld [vmem:[%s4 + $0x10] sm:$0xff]
      %v355 = vld [vmem:[%s4 + $0x18] sm:$0xff]
      %v356 = vld [vmem:[%s4 + $0x20] sm:$0xff]
      %v357 = vld [vmem:[%s276] sm:$0x1f]
      %v358 = vld [vmem:[%s276 + $0x8] sm:$0x1f]
      %v359 = vld [vmem:[%s285] sm:$0x3]
      %vm360 = vcmask 39936
      %v362 = vsel %vm360, %v297, 0
      %v365 = vsel %vm360, %v298, 0
      %v368 = vsel %vm360, %v299, 0
      %v371 = vsel %vm360, %v300, 0
      %v374 = vsel %vm360, %v301, 0
      %v377 = vsel %vm360, %v302, 0
      %v380 = vsel %vm360, %v303, 0
      %v383 = vsel %vm360, %v304, 0
      %v386 = vsel %vm360, %v305, 0
      %v389 = vsel %vm360, %v306, 0
      %v392 = vsel %vm360, %v307, 0
      %v395 = vsel %vm360, %v308, 0
      %v398 = vsel %vm360, %v309, 0
      %v401 = vsel %vm360, %v310, 0
      %v404 = vsel %vm360, %v311, 0
      %v407 = vsel %vm360, %v312, 0
      %v410 = vsel %vm360, %v313, 0
      %v413 = vsel %vm360, %v314, 0
      %v416 = vsel %vm360, %v315, 0
      %v419 = vsel %vm360, %v316, 0
      %v422 = vsel %vm360, %v317, 0
      %v425 = vsel %vm360, %v318, 0
      %v428 = vsel %vm360, %v319, 0
      %v431 = vsel %vm360, %v320, 0
      %v434 = vsel %vm360, %v321, 0
      %v437 = vsel %vm360, %v322, 0
      %v440 = vsel %vm360, %v323, 0
      %v443 = vsel %vm360, %v324, 0
      %v446 = vsel %vm360, %v325, 0
      %v449 = vsel %vm360, %v326, 0
      %v452 = vsel %vm360, %v327, 0
      %v455 = vsel %vm360, %v328, 0
      %v458 = vsel %vm360, %v329, 0
      %v461 = vsel %vm360, %v330, 0
      %v464 = vsel %vm360, %v331, 0
      %v467 = vsel %vm360, %v332, 0
      %v470 = vsel %vm360, %v333, 0
      %v473 = vsel %vm360, %v334, 0
      %v476 = vsel %vm360, %v335, 0
      %v479 = vsel %vm360, %v336, 0
      %vm481 = vcmask 1044480
      %v483 = vsel %vm481, %v357, 0
      %v486 = vsel %vm481, %v358, 0
      %488 = vmatprep.subr.mxu0 0.0
      %489 = vmatpush1.msra.mxu0 0.0
      %490 = vmatprep.subr.mxu0 0.0
      %491 = vmatpush1.msra.mxu0 0.0
      %492 = vmatprep.subr.mxu0 0.0
      %493 = vmatpush1.msra.mxu0 0.0
      %494 = vmatprep.subr.mxu0 0.0
      %495 = vmatpush1.msra.mxu0 0.0
      %496 = vmatprep.subr.mxu0 0.0
      %497 = vmatpush1.msra.mxu0 0.0
      %498 = vmatprep.subr.mxu0 0.0
      %499 = vmatpush1.msra.mxu0 0.0
      %500 = vmatprep.subr.mxu0 0.0
      %501 = vmatpush1.msra.mxu0 0.0
      %502 = vmatprep.subr.mxu0 0.0
      %503 = vmatpush1.msra.mxu0 0.0
      %504 = vmatprep.subr.mxu0 0.0
      %505 = vmatpush1.msra.mxu0 0.0
      %506 = vmatprep.subr.mxu0 0.0
      %507 = vmatpush1.msra.mxu0 0.0
      %508 = vmatprep.subr.mxu0 0.0
      %509 = vmatpush1.msra.mxu0 0.0
      %510 = vmatprep.subr.mxu0 0.0
      %511 = vmatpush1.msra.mxu0 0.0
      %512 = vmatprep.subr.mxu0 0.0
      %513 = vmatpush1.msra.mxu0 0.0
      %514 = vmatprep.subr.mxu0 0.0
      %515 = vmatpush1.msra.mxu0 0.0
      %516 = vmatprep.subr.mxu0 0.0
      %517 = vmatpush1.msra.mxu0 0.0
      %518 = vmatprep.subr.mxu0 %v486
      %519 = vmatpush1.msra.mxu0 %v483
      %520 = vmatprep.subr.mxu0 0.0
      %521 = vmatpush2.msra.mxu0 0.0
      %522 = vmatprep.subr.mxu0 0.0
      %523 = vmatpush2.msra.mxu0 0.0
      %524 = vmatprep.subr.mxu0 0.0
      %525 = vmatpush2.msra.mxu0 0.0
      %526 = vmatprep.subr.mxu0 0.0
      %527 = vmatpush2.msra.mxu0 0.0
      %528 = vmatprep.subr.mxu0 0.0
      %529 = vmatpush2.msra.mxu0 0.0
      %530 = vmatprep.subr.mxu0 0.0
      %531 = vmatpush2.msra.mxu0 0.0
      %532 = vmatprep.subr.mxu0 0.0
      %533 = vmatpush2.msra.mxu0 0.0
      %534 = vmatprep.subr.mxu0 0.0
      %535 = vmatpush2.msra.mxu0 0.0
      %536 = vmatprep.subr.mxu0 0.0
      %537 = vmatpush2.msra.mxu0 0.0
      %538 = vmatprep.subr.mxu0 0.0
      %539 = vmatpush2.msra.mxu0 0.0
      %540 = vmatprep.subr.mxu0 0.0
      %541 = vmatpush2.msra.mxu0 0.0
      %542 = vmatprep.subr.mxu0 0.0
      %543 = vmatpush2.msra.mxu0 0.0
      %544 = vmatprep.subr.mxu0 0.0
      %545 = vmatpush2.msra.mxu0 0.0
      %546 = vmatprep.subr.mxu0 0.0
      %547 = vmatpush2.msra.mxu0 0.0
      %548 = vmatprep.subr.mxu0 0.0
      %549 = vmatpush2.msra.mxu0 0.0
      %550 = vmatprep.subr.mxu0 0.0
      %551 = vmatpush2.msra.mxu0 0.0
      %552 = vmatprep.mubr.f32.mxu0 0.0
      %553 = vmatmul.mubr.f32.gmra.mxu0 %v362
      %v554 = vpop.f32.mrf.mxu0
      %v555 = vadd.f32 0.0, %v554
      %v556 = vpop.f32.mrf.mxu0
      %v557 = vadd.f32 0.0, %v556
      %558 = vmatprep.mubr.f32.mxu0 0.0
      %559 = vmatmul.mubr.f32.gmra.mxu0 %v365
      %v560 = vpop.f32.mrf.mxu0
      %v561 = vadd.f32 0.0, %v560
      %v562 = vpop.f32.mrf.mxu0
      %v563 = vadd.f32 0.0, %v562
      %564 = vmatprep.mubr.f32.mxu0 0.0
      %565 = vmatmul.mubr.f32.gmra.mxu0 %v368
      %v566 = vpop.f32.mrf.mxu0
      %v567 = vadd.f32 0.0, %v566
      %v568 = vpop.f32.mrf.mxu0
      %v569 = vadd.f32 0.0, %v568
      %570 = vmatprep.mubr.f32.mxu0 0.0
      %571 = vmatmul.mubr.f32.gmra.mxu0 %v371
      %v572 = vpop.f32.mrf.mxu0
      %v573 = vadd.f32 0.0, %v572
      %v574 = vpop.f32.mrf.mxu0
      %v575 = vadd.f32 0.0, %v574
      %576 = vmatprep.mubr.f32.mxu0 0.0
      %577 = vmatmul.mubr.f32.gmra.mxu0 %v374
      %v578 = vpop.f32.mrf.mxu0
      %v579 = vadd.f32 0.0, %v578
      %v580 = vpop.f32.mrf.mxu0
      %v581 = vadd.f32 0.0, %v580
      %582 = vmatprep.mubr.f32.mxu0 0.0
      %583 = vmatmul.mubr.f32.gmra.mxu0 %v377
      %v584 = vpop.f32.mrf.mxu0
      %v585 = vadd.f32 0.0, %v584
      %v586 = vpop.f32.mrf.mxu0
      %v587 = vadd.f32 0.0, %v586
      %588 = vmatprep.mubr.f32.mxu0 0.0
      %589 = vmatmul.mubr.f32.gmra.mxu0 %v380
      %v590 = vpop.f32.mrf.mxu0
      %v591 = vadd.f32 0.0, %v590
      %v592 = vpop.f32.mrf.mxu0
      %v593 = vadd.f32 0.0, %v592
      %594 = vmatprep.mubr.f32.mxu0 0.0
      %595 = vmatmul.mubr.f32.gmra.mxu0 %v383
      %v596 = vpop.f32.mrf.mxu0
      %v597 = vadd.f32 0.0, %v596
      %v598 = vpop.f32.mrf.mxu0
      %v599 = vadd.f32 0.0, %v598
      %600 = vmatprep.mubr.f32.mxu0 0.0
      %601 = vmatmul.mubr.f32.gmra.mxu0 %v386
      %v602 = vpop.f32.mrf.mxu0
      %v603 = vadd.f32 0.0, %v602
      %v604 = vpop.f32.mrf.mxu0
      %v605 = vadd.f32 0.0, %v604
      %606 = vmatprep.mubr.f32.mxu0 0.0
      %607 = vmatmul.mubr.f32.gmra.mxu0 %v389
      %v608 = vpop.f32.mrf.mxu0
      %v609 = vadd.f32 0.0, %v608
      %v610 = vpop.f32.mrf.mxu0
      %v611 = vadd.f32 0.0, %v610
      %612 = vmatprep.mubr.f32.mxu0 0.0
      %613 = vmatmul.mubr.f32.gmra.mxu0 %v392
      %v614 = vpop.f32.mrf.mxu0
      %v615 = vadd.f32 0.0, %v614
      %v616 = vpop.f32.mrf.mxu0
      %v617 = vadd.f32 0.0, %v616
      %618 = vmatprep.mubr.f32.mxu0 0.0
      %619 = vmatmul.mubr.f32.gmra.mxu0 %v395
      %v620 = vpop.f32.mrf.mxu0
      %v621 = vadd.f32 0.0, %v620
      %v622 = vpop.f32.mrf.mxu0
      %v623 = vadd.f32 0.0, %v622
      %624 = vmatprep.mubr.f32.mxu0 0.0
      %625 = vmatmul.mubr.f32.gmra.mxu0 %v398
      %v626 = vpop.f32.mrf.mxu0
      %v627 = vadd.f32 0.0, %v626
      %v628 = vpop.f32.mrf.mxu0
      %v629 = vadd.f32 0.0, %v628
      %630 = vmatprep.mubr.f32.mxu0 0.0
      %631 = vmatmul.mubr.f32.gmra.mxu0 %v401
      %v632 = vpop.f32.mrf.mxu0
      %v633 = vadd.f32 0.0, %v632
      %v634 = vpop.f32.mrf.mxu0
      %v635 = vadd.f32 0.0, %v634
      %636 = vmatprep.mubr.f32.mxu0 0.0
      %637 = vmatmul.mubr.f32.gmra.mxu0 %v404
      %v638 = vpop.f32.mrf.mxu0
      %v639 = vadd.f32 0.0, %v638
      %v640 = vpop.f32.mrf.mxu0
      %v641 = vadd.f32 0.0, %v640
      %642 = vmatprep.mubr.f32.mxu0 0.0
      %643 = vmatmul.mubr.f32.gmra.mxu0 %v407
      %v644 = vpop.f32.mrf.mxu0
      %v645 = vadd.f32 0.0, %v644
      %v646 = vpop.f32.mrf.mxu0
      %v647 = vadd.f32 0.0, %v646
      %648 = vmatprep.mubr.f32.mxu0 0.0
      %649 = vmatmul.mubr.f32.gmra.mxu0 %v410
      %v650 = vpop.f32.mrf.mxu0
      %v651 = vadd.f32 0.0, %v650
      %v652 = vpop.f32.mrf.mxu0
      %v653 = vadd.f32 0.0, %v652
      %654 = vmatprep.mubr.f32.mxu0 0.0
      %655 = vmatmul.mubr.f32.gmra.mxu0 %v413
      %v656 = vpop.f32.mrf.mxu0
      %v657 = vadd.f32 0.0, %v656
      %v658 = vpop.f32.mrf.mxu0
      %v659 = vadd.f32 0.0, %v658
      %660 = vmatprep.mubr.f32.mxu0 0.0
      %661 = vmatmul.mubr.f32.gmra.mxu0 %v416
      %v662 = vpop.f32.mrf.mxu0
      %v663 = vadd.f32 0.0, %v662
      %v664 = vpop.f32.mrf.mxu0
      %v665 = vadd.f32 0.0, %v664
      %666 = vmatprep.mubr.f32.mxu0 0.0
      %667 = vmatmul.mubr.f32.gmra.mxu0 %v419
      %v668 = vpop.f32.mrf.mxu0
      %v669 = vadd.f32 0.0, %v668
      %v670 = vpop.f32.mrf.mxu0
      %v671 = vadd.f32 0.0, %v670
      %672 = vmatprep.mubr.f32.mxu0 0.0
      %673 = vmatmul.mubr.f32.gmra.mxu0 %v422
      %v674 = vpop.f32.mrf.mxu0
      %v675 = vadd.f32 0.0, %v674
      %v676 = vpop.f32.mrf.mxu0
      %v677 = vadd.f32 0.0, %v676
      %678 = vmatprep.mubr.f32.mxu0 0.0
      %679 = vmatmul.mubr.f32.gmra.mxu0 %v425
      %v680 = vpop.f32.mrf.mxu0
      %v681 = vadd.f32 0.0, %v680
      %v682 = vpop.f32.mrf.mxu0
      %v683 = vadd.f32 0.0, %v682
      %684 = vmatprep.mubr.f32.mxu0 0.0
      %685 = vmatmul.mubr.f32.gmra.mxu0 %v428
      %v686 = vpop.f32.mrf.mxu0
      %v687 = vadd.f32 0.0, %v686
      %v688 = vpop.f32.mrf.mxu0
      %v689 = vadd.f32 0.0, %v688
      %690 = vmatprep.mubr.f32.mxu0 0.0
      %691 = vmatmul.mubr.f32.gmra.mxu0 %v431
      %v692 = vpop.f32.mrf.mxu0
      %v693 = vadd.f32 0.0, %v692
      %v694 = vpop.f32.mrf.mxu0
      %v695 = vadd.f32 0.0, %v694
      %696 = vmatprep.mubr.f32.mxu0 0.0
      %697 = vmatmul.mubr.f32.gmra.mxu0 %v434
      %v698 = vpop.f32.mrf.mxu0
      %v699 = vadd.f32 0.0, %v698
      %v700 = vpop.f32.mrf.mxu0
      %v701 = vadd.f32 0.0, %v700
      %702 = vmatprep.mubr.f32.mxu0 0.0
      %703 = vmatmul.mubr.f32.gmra.mxu0 %v437
      %v704 = vpop.f32.mrf.mxu0
      %v705 = vadd.f32 0.0, %v704
      %v706 = vpop.f32.mrf.mxu0
      %v707 = vadd.f32 0.0, %v706
      %708 = vmatprep.mubr.f32.mxu0 0.0
      %709 = vmatmul.mubr.f32.gmra.mxu0 %v440
      %v710 = vpop.f32.mrf.mxu0
      %v711 = vadd.f32 0.0, %v710
      %v712 = vpop.f32.mrf.mxu0
      %v713 = vadd.f32 0.0, %v712
      %714 = vmatprep.mubr.f32.mxu0 0.0
      %715 = vmatmul.mubr.f32.gmra.mxu0 %v443
      %v716 = vpop.f32.mrf.mxu0
      %v717 = vadd.f32 0.0, %v716
      %v718 = vpop.f32.mrf.mxu0
      %v719 = vadd.f32 0.0, %v718
      %720 = vmatprep.mubr.f32.mxu0 0.0
      %721 = vmatmul.mubr.f32.gmra.mxu0 %v446
      %v722 = vpop.f32.mrf.mxu0
      %v723 = vadd.f32 0.0, %v722
      %v724 = vpop.f32.mrf.mxu0
      %v725 = vadd.f32 0.0, %v724
      %726 = vmatprep.mubr.f32.mxu0 0.0
      %727 = vmatmul.mubr.f32.gmra.mxu0 %v449
      %v728 = vpop.f32.mrf.mxu0
      %v729 = vadd.f32 0.0, %v728
      %v730 = vpop.f32.mrf.mxu0
      %v731 = vadd.f32 0.0, %v730
      %732 = vmatprep.mubr.f32.mxu0 0.0
      %733 = vmatmul.mubr.f32.gmra.mxu0 %v452
      %v734 = vpop.f32.mrf.mxu0
      %v735 = vadd.f32 0.0, %v734
      %v736 = vpop.f32.mrf.mxu0
      %v737 = vadd.f32 0.0, %v736
      %738 = vmatprep.mubr.f32.mxu0 0.0
      %739 = vmatmul.mubr.f32.gmra.mxu0 %v455
      %v740 = vpop.f32.mrf.mxu0
      %v741 = vadd.f32 0.0, %v740
      %v742 = vpop.f32.mrf.mxu0
      %v743 = vadd.f32 0.0, %v742
      %744 = vmatprep.mubr.f32.mxu0 0.0
      %745 = vmatmul.mubr.f32.gmra.mxu0 %v458
      %v746 = vpop.f32.mrf.mxu0
      %v747 = vadd.f32 0.0, %v746
      %v748 = vpop.f32.mrf.mxu0
      %v749 = vadd.f32 0.0, %v748
      %750 = vmatprep.mubr.f32.mxu0 0.0
      %751 = vmatmul.mubr.f32.gmra.mxu0 %v461
      %v752 = vpop.f32.mrf.mxu0
      %v753 = vadd.f32 0.0, %v752
      %v754 = vpop.f32.mrf.mxu0
      %v755 = vadd.f32 0.0, %v754
      %756 = vmatprep.mubr.f32.mxu0 0.0
      %757 = vmatmul.mubr.f32.gmra.mxu0 %v464
      %v758 = vpop.f32.mrf.mxu0
      %v759 = vadd.f32 0.0, %v758
      %v760 = vpop.f32.mrf.mxu0
      %v761 = vadd.f32 0.0, %v760
      %762 = vmatprep.mubr.f32.mxu0 0.0
      %763 = vmatmul.mubr.f32.gmra.mxu0 %v467
      %v764 = vpop.f32.mrf.mxu0
      %v765 = vadd.f32 0.0, %v764
      %v766 = vpop.f32.mrf.mxu0
      %v767 = vadd.f32 0.0, %v766
      %768 = vmatprep.mubr.f32.mxu0 0.0
      %769 = vmatmul.mubr.f32.gmra.mxu0 %v470
      %v770 = vpop.f32.mrf.mxu0
      %v771 = vadd.f32 0.0, %v770
      %v772 = vpop.f32.mrf.mxu0
      %v773 = vadd.f32 0.0, %v772
      %774 = vmatprep.mubr.f32.mxu0 0.0
      %775 = vmatmul.mubr.f32.gmra.mxu0 %v473
      %v776 = vpop.f32.mrf.mxu0
      %v777 = vadd.f32 0.0, %v776
      %v778 = vpop.f32.mrf.mxu0
      %v779 = vadd.f32 0.0, %v778
      %780 = vmatprep.mubr.f32.mxu0 0.0
      %781 = vmatmul.mubr.f32.gmra.mxu0 %v476
      %v782 = vpop.f32.mrf.mxu0
      %v783 = vadd.f32 0.0, %v782
      %v784 = vpop.f32.mrf.mxu0
      %v785 = vadd.f32 0.0, %v784
      %786 = vmatprep.mubr.f32.mxu0 0.0
      %787 = vmatmul.mubr.f32.gmra.mxu0 %v479
      %v788 = vpop.f32.mrf.mxu0
      %v789 = vadd.f32 0.0, %v788
      %v790 = vpop.f32.mrf.mxu0
      %v791 = vadd.f32 0.0, %v790
      %792 = vdwg.mxu0
      %v793 = vmax.f32 %v555, 0.0
      %v794 = vmax.f32 %v557, 0.0
      %v795 = vmax.f32 %v561, 0.0
      %v796 = vmax.f32 %v563, 0.0
      %v797 = vmax.f32 %v567, 0.0
      %v798 = vmax.f32 %v569, 0.0
      %v799 = vmax.f32 %v573, 0.0
      %v800 = vmax.f32 %v575, 0.0
      %v801 = vmax.f32 %v579, 0.0
      %v802 = vmax.f32 %v581, 0.0
      %v803 = vmax.f32 %v585, 0.0
      %v804 = vmax.f32 %v587, 0.0
      %v805 = vmax.f32 %v591, 0.0
      %v806 = vmax.f32 %v593, 0.0
      %v807 = vmax.f32 %v597, 0.0
      %v808 = vmax.f32 %v599, 0.0
      %v809 = vmax.f32 %v603, 0.0
      %v810 = vmax.f32 %v605, 0.0
      %v811 = vmax.f32 %v609, 0.0
      %v812 = vmax.f32 %v611, 0.0
      %v813 = vmax.f32 %v615, 0.0
      %v814 = vmax.f32 %v617, 0.0
      %v815 = vmax.f32 %v621, 0.0
      %v816 = vmax.f32 %v623, 0.0
      %v817 = vmax.f32 %v627, 0.0
      %v818 = vmax.f32 %v629, 0.0
      %v819 = vmax.f32 %v633, 0.0
      %v820 = vmax.f32 %v635, 0.0
      %v821 = vmax.f32 %v639, 0.0
      %v822 = vmax.f32 %v641, 0.0
      %v823 = vmax.f32 %v645, 0.0
      %v824 = vmax.f32 %v647, 0.0
      %v825 = vmax.f32 %v651, 0.0
      %v826 = vmax.f32 %v653, 0.0
      %v827 = vmax.f32 %v657, 0.0
      %v828 = vmax.f32 %v659, 0.0
      %v829 = vmax.f32 %v663, 0.0
      %v830 = vmax.f32 %v665, 0.0
      %v831 = vmax.f32 %v669, 0.0
      %v832 = vmax.f32 %v671, 0.0
      %v833 = vmax.f32 %v675, 0.0
      %v834 = vmax.f32 %v677, 0.0
      %v835 = vmax.f32 %v681, 0.0
      %v836 = vmax.f32 %v683, 0.0
      %v837 = vmax.f32 %v687, 0.0
      %v838 = vmax.f32 %v689, 0.0
      %v839 = vmax.f32 %v693, 0.0
      %v840 = vmax.f32 %v695, 0.0
      %v841 = vmax.f32 %v699, 0.0
      %v842 = vmax.f32 %v701, 0.0
      %v843 = vmax.f32 %v705, 0.0
      %v844 = vmax.f32 %v707, 0.0
      %v845 = vmax.f32 %v711, 0.0
      %v846 = vmax.f32 %v713, 0.0
      %v847 = vmax.f32 %v717, 0.0
      %v848 = vmax.f32 %v719, 0.0
      %v849 = vmax.f32 %v723, 0.0
      %v850 = vmax.f32 %v725, 0.0
      %v851 = vmax.f32 %v729, 0.0
      %v852 = vmax.f32 %v731, 0.0
      %v853 = vmax.f32 %v735, 0.0
      %v854 = vmax.f32 %v737, 0.0
      %v855 = vmax.f32 %v741, 0.0
      %v856 = vmax.f32 %v743, 0.0
      %v857 = vmax.f32 %v747, 0.0
      %v858 = vmax.f32 %v749, 0.0
      %v859 = vmax.f32 %v753, 0.0
      %v860 = vmax.f32 %v755, 0.0
      %v861 = vmax.f32 %v759, 0.0
      %v862 = vmax.f32 %v761, 0.0
      %v863 = vmax.f32 %v765, 0.0
      %v864 = vmax.f32 %v767, 0.0
      %v865 = vmax.f32 %v771, 0.0
      %v866 = vmax.f32 %v773, 0.0
      %v867 = vmax.f32 %v777, 0.0
      %v868 = vmax.f32 %v779, 0.0
      %v869 = vmax.f32 %v783, 0.0
      %v870 = vmax.f32 %v785, 0.0
      %v871 = vmax.f32 %v789, 0.0
      %v872 = vmax.f32 %v791, 0.0
      %874 = vset.pattern.permute.xlu0 0
      %875 = vperm.xlu0 %874, %v352
      %v876 = vpop.permute.xlu0 %875
      %879 = vset.pattern.permute.xlu0 0
      %880 = vperm.xlu0 %879, %v353
      %v881 = vpop.permute.xlu0 %880
      %884 = vset.pattern.permute.xlu0 0
      %885 = vperm.xlu0 %884, %v354
      %v886 = vpop.permute.xlu0 %885
      %889 = vset.pattern.permute.xlu0 0
      %890 = vperm.xlu0 %889, %v355
      %v891 = vpop.permute.xlu0 %890
      %894 = vset.pattern.permute.xlu0 0
      %895 = vperm.xlu0 %894, %v356
      %v896 = vpop.permute.xlu0 %895
      %vm898 = vcmask 523264
      %v900 = vsel %vm898, %v339, 0
      %v903 = vsel %vm898, %v342, 0
      %v906 = vsel %vm898, %v345, 0
      %v909 = vsel %vm898, %v348, 0
      %v912 = vsel %vm898, %v351, 0
      %914 = vmatprep.subr.mxu0 %v824
      %915 = vmatpush1.msra.mxu0 %v823
      %916 = vmatprep.subr.mxu0 %v822
      %917 = vmatpush1.msra.mxu0 %v821
      %918 = vmatprep.subr.mxu0 %v820
      %919 = vmatpush1.msra.mxu0 %v819
      %920 = vmatprep.subr.mxu0 %v818
      %921 = vmatpush1.msra.mxu0 %v817
      %922 = vmatprep.subr.mxu0 %v816
      %923 = vmatpush1.msra.mxu0 %v815
      %924 = vmatprep.subr.mxu0 %v814
      %925 = vmatpush1.msra.mxu0 %v813
      %926 = vmatprep.subr.mxu0 %v812
      %927 = vmatpush1.msra.mxu0 %v811
      %928 = vmatprep.subr.mxu0 %v810
      %929 = vmatpush1.msra.mxu0 %v809
      %930 = vmatprep.subr.mxu0 %v808
      %931 = vmatpush1.msra.mxu0 %v807
      %932 = vmatprep.subr.mxu0 %v806
      %933 = vmatpush1.msra.mxu0 %v805
      %934 = vmatprep.subr.mxu0 %v804
      %935 = vmatpush1.msra.mxu0 %v803
      %936 = vmatprep.subr.mxu0 %v802
      %937 = vmatpush1.msra.mxu0 %v801
      %938 = vmatprep.subr.mxu0 %v800
      %939 = vmatpush1.msra.mxu0 %v799
      %940 = vmatprep.subr.mxu0 %v798
      %941 = vmatpush1.msra.mxu0 %v797
      %942 = vmatprep.subr.mxu0 %v796
      %943 = vmatpush1.msra.mxu0 %v795
      %944 = vmatprep.subr.mxu0 %v794
      %945 = vmatpush1.msra.mxu0 %v793
      %946 = vmatprep.subr.mxu0 %v856
      %947 = vmatpush2.msra.mxu0 %v855
      %948 = vmatprep.subr.mxu0 %v854
      %949 = vmatpush2.msra.mxu0 %v853
      %950 = vmatprep.subr.mxu0 %v852
      %951 = vmatpush2.msra.mxu0 %v851
      %952 = vmatprep.subr.mxu0 %v850
      %953 = vmatpush2.msra.mxu0 %v849
      %954 = vmatprep.subr.mxu0 %v848
      %955 = vmatpush2.msra.mxu0 %v847
      %956 = vmatprep.subr.mxu0 %v846
      %957 = vmatpush2.msra.mxu0 %v845
      %958 = vmatprep.subr.mxu0 %v844
      %959 = vmatpush2.msra.mxu0 %v843
      %960 = vmatprep.subr.mxu0 %v842
      %961 = vmatpush2.msra.mxu0 %v841
      %962 = vmatprep.subr.mxu0 %v840
      %963 = vmatpush2.msra.mxu0 %v839
      %964 = vmatprep.subr.mxu0 %v838
      %965 = vmatpush2.msra.mxu0 %v837
      %966 = vmatprep.subr.mxu0 %v836
      %967 = vmatpush2.msra.mxu0 %v835
      %968 = vmatprep.subr.mxu0 %v834
      %969 = vmatpush2.msra.mxu0 %v833
      %970 = vmatprep.subr.mxu0 %v832
      %971 = vmatpush2.msra.mxu0 %v831
      %972 = vmatprep.subr.mxu0 %v830
      %973 = vmatpush2.msra.mxu0 %v829
      %974 = vmatprep.subr.mxu0 %v828
      %975 = vmatpush2.msra.mxu0 %v827
      %976 = vmatprep.subr.mxu0 %v826
      %977 = vmatpush2.msra.mxu0 %v825
      %978 = vmatprep.mubr.f32.mxu0 %v338
      %979 = vmatmul.mubr.f32.gmra.mxu0 %v337
      %v980 = vpop.f32.mrf.mxu0
      %v981 = vadd.f32 %v876, %v980
      %v982 = vpop.f32.mrf.mxu0
      %v983 = vadd.f32 %v876, %v982
      %984 = vmatprep.mubr.f32.mxu0 %v341
      %985 = vmatmul.mubr.f32.gmra.mxu0 %v340
      %v986 = vpop.f32.mrf.mxu0
      %v987 = vadd.f32 %v881, %v986
      %v988 = vpop.f32.mrf.mxu0
      %v989 = vadd.f32 %v881, %v988
      %990 = vmatprep.mubr.f32.mxu0 %v344
      %991 = vmatmul.mubr.f32.gmra.mxu0 %v343
      %v992 = vpop.f32.mrf.mxu0
      %v993 = vadd.f32 %v886, %v992
      %v994 = vpop.f32.mrf.mxu0
      %v995 = vadd.f32 %v886, %v994
      %996 = vmatprep.mubr.f32.mxu0 %v347
      %997 = vmatmul.mubr.f32.gmra.mxu0 %v346
      %v998 = vpop.f32.mrf.mxu0
      %v999 = vadd.f32 %v891, %v998
      %v1000 = vpop.f32.mrf.mxu0
      %v1001 = vadd.f32 %v891, %v1000
      %1002 = vmatprep.mubr.f32.mxu0 %v350
      %1003 = vmatmul.mubr.f32.gmra.mxu0 %v349
      %v1004 = vpop.f32.mrf.mxu0
      %v1005 = vadd.f32 %v896, %v1004
      %v1006 = vpop.f32.mrf.mxu0
      %v1007 = vadd.f32 %v896, %v1006
      %1008 = vdwg.mxu0
      %1009 = vmatprep.subr.mxu0 0.0
      %1010 = vmatpush1.msra.mxu0 0.0
      %1011 = vmatprep.subr.mxu0 0.0
      %1012 = vmatpush1.msra.mxu0 0.0
      %1013 = vmatprep.subr.mxu0 0.0
      %1014 = vmatpush1.msra.mxu0 0.0
      %1015 = vmatprep.subr.mxu0 0.0
      %1016 = vmatpush1.msra.mxu0 0.0
      %1017 = vmatprep.subr.mxu0 0.0
      %1018 = vmatpush1.msra.mxu0 0.0
      %1019 = vmatprep.subr.mxu0 0.0
      %1020 = vmatpush1.msra.mxu0 0.0
      %1021 = vmatprep.subr.mxu0 0.0
      %1022 = vmatpush1.msra.mxu0 0.0
      %1023 = vmatprep.subr.mxu0 0.0
      %1024 = vmatpush1.msra.mxu0 0.0
      %1025 = vmatprep.subr.mxu0 %v872
      %1026 = vmatpush1.msra.mxu0 %v871
      %1027 = vmatprep.subr.mxu0 %v870
      %1028 = vmatpush1.msra.mxu0 %v869
      %1029 = vmatprep.subr.mxu0 %v868
      %1030 = vmatpush1.msra.mxu0 %v867
      %1031 = vmatprep.subr.mxu0 %v866
      %1032 = vmatpush1.msra.mxu0 %v865
      %1033 = vmatprep.subr.mxu0 %v864
      %1034 = vmatpush1.msra.mxu0 %v863
      %1035 = vmatprep.subr.mxu0 %v862
      %1036 = vmatpush1.msra.mxu0 %v861
      %1037 = vmatprep.subr.mxu0 %v860
      %1038 = vmatpush1.msra.mxu0 %v859
      %1039 = vmatprep.subr.mxu0 %v858
      %1040 = vmatpush1.msra.mxu0 %v857
      %1041 = vmatprep.subr.mxu0 0.0
      %1042 = vmatpush2.msra.mxu0 0.0
      %1043 = vmatprep.subr.mxu0 0.0
      %1044 = vmatpush2.msra.mxu0 0.0
      %1045 = vmatprep.subr.mxu0 0.0
      %1046 = vmatpush2.msra.mxu0 0.0
      %1047 = vmatprep.subr.mxu0 0.0
      %1048 = vmatpush2.msra.mxu0 0.0
      %1049 = vmatprep.subr.mxu0 0.0
      %1050 = vmatpush2.msra.mxu0 0.0
      %1051 = vmatprep.subr.mxu0 0.0
      %1052 = vmatpush2.msra.mxu0 0.0
      %1053 = vmatprep.subr.mxu0 0.0
      %1054 = vmatpush2.msra.mxu0 0.0
      %1055 = vmatprep.subr.mxu0 0.0
      %1056 = vmatpush2.msra.mxu0 0.0
      %1057 = vmatprep.subr.mxu0 0.0
      %1058 = vmatpush2.msra.mxu0 0.0
      %1059 = vmatprep.subr.mxu0 0.0
      %1060 = vmatpush2.msra.mxu0 0.0
      %1061 = vmatprep.subr.mxu0 0.0
      %1062 = vmatpush2.msra.mxu0 0.0
      %1063 = vmatprep.subr.mxu0 0.0
      %1064 = vmatpush2.msra.mxu0 0.0
      %1065 = vmatprep.subr.mxu0 0.0
      %1066 = vmatpush2.msra.mxu0 0.0
      %1067 = vmatprep.subr.mxu0 0.0
      %1068 = vmatpush2.msra.mxu0 0.0
      %1069 = vmatprep.subr.mxu0 0.0
      %1070 = vmatpush2.msra.mxu0 0.0
      %1071 = vmatprep.subr.mxu0 0.0
      %1072 = vmatpush2.msra.mxu0 0.0
      %1073 = vmatprep.mubr.f32.mxu0 0.0
      %1074 = vmatmul.mubr.f32.gmra.mxu0 %v900
      %v1075 = vpop.f32.mrf.mxu0
      %v1076 = vadd.f32 %v981, %v1075
      %v1077 = vpop.f32.mrf.mxu0
      %v1078 = vadd.f32 %v983, %v1077
      %1079 = vmatprep.mubr.f32.mxu0 0.0
      %1080 = vmatmul.mubr.f32.gmra.mxu0 %v903
      %v1081 = vpop.f32.mrf.mxu0
      %v1082 = vadd.f32 %v987, %v1081
      %v1083 = vpop.f32.mrf.mxu0
      %v1084 = vadd.f32 %v989, %v1083
      %1085 = vmatprep.mubr.f32.mxu0 0.0
      %1086 = vmatmul.mubr.f32.gmra.mxu0 %v906
      %v1087 = vpop.f32.mrf.mxu0
      %v1088 = vadd.f32 %v993, %v1087
      %v1089 = vpop.f32.mrf.mxu0
      %v1090 = vadd.f32 %v995, %v1089
      %1091 = vmatprep.mubr.f32.mxu0 0.0
      %1092 = vmatmul.mubr.f32.gmra.mxu0 %v909
      %v1093 = vpop.f32.mrf.mxu0
      %v1094 = vadd.f32 %v999, %v1093
      %v1095 = vpop.f32.mrf.mxu0
      %v1096 = vadd.f32 %v1001, %v1095
      %1097 = vmatprep.mubr.f32.mxu0 0.0
      %1098 = vmatmul.mubr.f32.gmra.mxu0 %v912
      %v1099 = vpop.f32.mrf.mxu0
      %v1100 = vadd.f32 %v1005, %v1099
      %v1101 = vpop.f32.mrf.mxu0
      %v1102 = vadd.f32 %v1007, %v1101
      %1103 = vdwg.mxu0
      %v1104 = vmax.f32 %v1076, 0.0
      %v1105 = vmax.f32 %v1078, 0.0
      %v1106 = vmax.f32 %v1082, 0.0
      %v1107 = vmax.f32 %v1084, 0.0
      %v1108 = vmax.f32 %v1088, 0.0
      %v1109 = vmax.f32 %v1090, 0.0
      %v1110 = vmax.f32 %v1094, 0.0
      %v1111 = vmax.f32 %v1096, 0.0
      %v1112 = vmax.f32 %v1100, 0.0
      %v1113 = vmax.f32 %v1102, 0.0
      %vm1114 = vcmp.eq.s32.totalorder %v359, 0
      %v1115 = vsel %vm1114, 1, 0
      %v1116 = vlaneseq
      %v1117 = vshrl.u32 %v1116, 7
      %v1118 = vsub.s32 0, %v1117
      %v1119 = vrot.slane %v1115, %v1118
      %v1120 = vlaneseq
      %v1121 = vshrl.u32 %v1120, 7
      %v1122 = vsub.s32 1, %v1121
      %v1123 = vrot.slane %v1115, %v1122
      %vm1124 = vcmp.eq.s32.totalorder %v1119, 1
      %vm1125 = vcmp.eq.s32.totalorder %v1123, 1
      %v1126 = vsel %vm1124, %v1104, 0.0
      %v1127 = vsel %vm1125, %v1105, 0.0
      %vm1128 = vcmp.eq.s32.totalorder %v359, 1
      %v1129 = vsel %vm1128, 1, 0
      %v1130 = vlaneseq
      %v1131 = vshrl.u32 %v1130, 7
      %v1132 = vsub.s32 0, %v1131
      %v1133 = vrot.slane %v1129, %v1132
      %v1134 = vlaneseq
      %v1135 = vshrl.u32 %v1134, 7
      %v1136 = vsub.s32 1, %v1135
      %v1137 = vrot.slane %v1129, %v1136
      %vm1138 = vcmp.eq.s32.totalorder %v1133, 1
      %vm1139 = vcmp.eq.s32.totalorder %v1137, 1
      %v1140 = vsel %vm1138, %v1106, %v1126
      %v1141 = vsel %vm1139, %v1107, %v1127
      %vm1142 = vcmp.eq.s32.totalorder %v359, 2
      %v1143 = vsel %vm1142, 1, 0
      %v1144 = vlaneseq
      %v1145 = vshrl.u32 %v1144, 7
      %v1146 = vsub.s32 0, %v1145
      %v1147 = vrot.slane %v1143, %v1146
      %v1148 = vlaneseq
      %v1149 = vshrl.u32 %v1148, 7
      %v1150 = vsub.s32 1, %v1149
      %v1151 = vrot.slane %v1143, %v1150
      %vm1152 = vcmp.eq.s32.totalorder %v1147, 1
      %vm1153 = vcmp.eq.s32.totalorder %v1151, 1
      %v1154 = vsel %vm1152, %v1108, %v1140
      %v1155 = vsel %vm1153, %v1109, %v1141
      %vm1156 = vcmp.eq.s32.totalorder %v359, 3
      %v1157 = vsel %vm1156, 1, 0
      %v1158 = vlaneseq
      %v1159 = vshrl.u32 %v1158, 7
      %v1160 = vsub.s32 0, %v1159
      %v1161 = vrot.slane %v1157, %v1160
      %v1162 = vlaneseq
      %v1163 = vshrl.u32 %v1162, 7
      %v1164 = vsub.s32 1, %v1163
      %v1165 = vrot.slane %v1157, %v1164
      %vm1166 = vcmp.eq.s32.totalorder %v1161, 1
      %vm1167 = vcmp.eq.s32.totalorder %v1165, 1
      %v1168 = vsel %vm1166, %v1110, %v1154
      %v1169 = vsel %vm1167, %v1111, %v1155
      %vm1170 = vcmp.eq.s32.totalorder %v359, 4
      %v1171 = vsel %vm1170, 1, 0
      %v1172 = vlaneseq
      %v1173 = vshrl.u32 %v1172, 7
      %v1174 = vsub.s32 0, %v1173
      %v1175 = vrot.slane %v1171, %v1174
      %v1176 = vlaneseq
      %v1177 = vshrl.u32 %v1176, 7
      %v1178 = vsub.s32 1, %v1177
      %v1179 = vrot.slane %v1171, %v1178
      %vm1180 = vcmp.eq.s32.totalorder %v1175, 1
      %vm1181 = vcmp.eq.s32.totalorder %v1179, 1
      %v1182 = vsel %vm1180, %v1112, %v1168
      %v1183 = vsel %vm1181, %v1113, %v1169
      %1184 = vst [vmem:[%s295] sm:$0xff] %v1182
      %1185 = vst [vmem:[%s295 + $0x8] sm:$0xff] %v1183
      %s1186 = smul.u32 2, %s21
      %p1187 = scmp.lt.s32.totalorder %s20, 1
      %s1188 = scalar_select %p1187, %s20, 1
      %p1189 = scmp.lt.s32.totalorder %s1186, 1
      %s1190 = scalar_select %p1189, %s1186, 1
      %s1191 = smul.addr %s1188, 2
      %s1192 = sadd.s32 %s1190, %s1191
      %s1193 = smul.addr %s1192, 8
      %s1194 = scalar_lea.vmem %s5, %s1193
      // Predicated region
      $region41: #{clusters_up_pallas.1} parent=39 // pred_check
        %p1195 = pneg %p167
      $region42: #{clusters_up_pallas.1} parent=39 // pred_check_branch
        %1197 = sbr.rel (%p1195) target = $region44
      $region43: #{clusters_up_pallas.1} parent=39 // pred_region
        %s1198 = smul.u32 2, %s21
      $region44: #{clusters_up_pallas.1} parent=39 // pred_fallthru
        _
    $region40: #{clusters_up_pallas.1} parent=5 // pred_fallthru
      _
    %p1199 = scmp.le.s32.totalorder 2, %s11
    // Predicated region
    $region45: #{clusters_up_pallas.1} parent=5 // pred_check
      %p1200 = pneg %p1199
    $region46: #{clusters_up_pallas.1} parent=5 // pred_check_branch
      %1202 = sbr.rel (%p1200) target = $region48
    $region47: #{clusters_up_pallas.1} parent=5 // pred_region
      %s1203 = ssub.s32 %s11, 2
      // Predicated region
      $region49: #{clusters_up_pallas.1} parent=47 // pred_check
        %p1204 = pneg %p173
      $region50: #{clusters_up_pallas.1} parent=47 // pred_check_branch
        %1206 = sbr.rel (%p1204) target = $region52
      $region51: #{clusters_up_pallas.1} parent=47 // pred_region
        %s1207 = smul.u32 2, %s23
        %p1208 = scmp.lt.s32.totalorder %s22, 1
        %s1209 = scalar_select %p1208, %s22, 1
        %p1210 = scmp.lt.s32.totalorder %s1207, 1
        %s1211 = scalar_select %p1210, %s1207, 1
        %s1212 = smul.addr %s1209, 2
        %s1213 = sadd.s32 %s1211, %s1212
        %s1214 = smul.addr %s1213, 8
        %s1215 = scalar_lea.vmem %s5, %s1214
      $region52: #{clusters_up_pallas.1} parent=47 // pred_fallthru
        _
    $region48: #{clusters_up_pallas.1} parent=5 // pred_fallthru
      _
  $region6: #{clusters_up_pallas.1} parent=0 // loop_footer
    %s15 = sadd.s32 1, %s11
  $region7: #{clusters_up_pallas.1} parent=0 // loop_footer_branch
    %10 = sbr.rel target = $region3
  $region8: #{clusters_up_pallas.1} parent=0 // loop_exit
    _

</llo_original>
